<compile_context>
chip_gen: v7x
topology: tpu7x:2x2x1
jax: 0.10.0
libtpu: 0.0.40
codegen_flags: <defaults>
</compile_context>

<pallas_src>
import functools
from typing import NamedTuple

import jax
import jax.numpy as jnp
from jax import lax
from jax.experimental import pallas as pl
from jax.experimental.pallas import tpu as pltpu

EPS = 1e-5
_LANE = 128


def _round_up(x, m):
    return -(-x // m) * m


def _cdiv(a, b):
    return -(-a // b)


_VMEM_CFG = None


def _vmem_config():
    """(vmem_limit_bytes, per-step tile budget) sized from the chip's VMEM."""
    global _VMEM_CFG
    if _VMEM_CFG is None:
        cap = 64 * 1024 * 1024                      # conservative (v7x) fallback
        try:
            cap = int(getattr(pltpu.get_tpu_info(), "vmem_capacity_bytes", cap))
        except Exception:
            pass
        limit = min(cap // 2, 64 * 1024 * 1024)     # 64 MiB on v5e/v6e, 32 MiB on v7x
        _VMEM_CFG = (limit, limit // 3)
    return _VMEM_CFG


def _pick_row_tile(h_out, n_batch, *, stride, halo, ksize, lane_in,
                   lane_out_pad, in_itemsize, n_outs, w_bytes, budget,
                   min_steps=8):
    """Output-row tile (multiple of 8): VMEM-budgeted, waste-minimizing, and
    with enough grid steps for megacore sharding / double-buffer overlap."""
    per_row = (2 * in_itemsize * stride * lane_in          # x block, double-buffered
               + 2 * in_itemsize * lane_in                 # x_old block (worst case)
               + 2 * n_outs * 4 * lane_out_pad             # f32 output blocks, dbuf
               + 4 * (stride + 2 * ksize + 1) * lane_in    # x_ext + K taps + x_cat
               + 4 * 6 * lane_out_pad)                     # y, z, gate temporaries
    fixed = 2 * in_itemsize * halo * lane_in + 8 * lane_out_pad + 2 * w_bytes
    rt_budget = max(8, ((budget - fixed) // max(per_row, 1)) // 8 * 8)
    rt_min = _round_up(max(_cdiv(halo, stride), 8), 8)     # halo must fit one tile span
    rt_cap = min(rt_budget, 2048, _round_up(h_out, 8))
    rt_cap = max(rt_cap, rt_min)

    best = None
    for rt in range(rt_min, rt_cap + 1, 8):
        n_t = _cdiv(h_out, rt)
        steps = n_batch * n_t
        waste_bucket = ((n_t * rt - h_out) * 16) // (n_t * rt)
        key = (steps < min_steps, waste_bucket,
               -steps if steps < min_steps else 0, -rt)
        if best is None or key < best[0]:
            best = (key, rt, n_t)
    return best[1], best[2]


class _ConvCfg(NamedTuple):
    rows: int
    stride: int
    dilation: int
    ksize: int
    w_dim: int
    cin: int
    cout: int
    lane_in: int
    lane_out: int
    lane_out_pad: int
    pad: int
    use_blockdiag: bool


# ----------------------------------------------------------------------------
# kernel bodies
# ----------------------------------------------------------------------------
def _pad_lanes(y, width):
    extra = width - y.shape[-1]
    if extra:
        y = jnp.concatenate(
            [y, jnp.zeros(y.shape[:-1] + (extra,), y.dtype)], axis=-1)
    return y


def _x_ext(x_ref, halo_ref):
    # [rows*stride + halo, W*Cin] in the DMA dtype (f32 or bf16)
    return jnp.concatenate([x_ref[0], halo_ref[0, 0]], axis=0)


def _conv_from_ext(x_ext, w_ref, cfg):
    """Causal dilated conv of one tile -> f32 folded [rows, lane_out_pad]."""
    rt, st, dil, K = cfg.rows, cfg.stride, cfg.dilation, cfg.ksize
    span = (rt - 1) * st + 1
    taps = []
    for t in range(K):
        s0 = t * dil
        if st == 1:
            taps.append(lax.slice_in_dim(x_ext, s0, s0 + rt, axis=0))
        else:
            taps.append(lax.slice(x_ext, (s0, 0), (s0 + span, cfg.lane_in),
                                  (st, 1)))
    if cfg.use_blockdiag:
        # One lane-folded matmul; the block-diagonal weight lands the result
        # directly in the lane-dense [rows, W*Cout_pad] layout (no reshapes).
        x_cat = taps[0] if K == 1 else jnp.concatenate(taps, axis=-1)
        return jnp.dot(x_cat, w_ref[...], preferred_element_type=jnp.float32)
    # Fallback (folded weight too large for VMEM): classic im2col.
    x_col = jnp.concatenate([t.reshape(rt, cfg.w_dim, cfg.cin) for t in taps],
                            axis=-1)
    y = jnp.dot(x_col.reshape(rt * cfg.w_dim, K * cfg.cin), w_ref[...],
                preferred_element_type=jnp.float32)
    return _pad_lanes(y.reshape(rt, cfg.lane_out), cfg.lane_out_pad)


def _gated(z):
    """tanh(z) * sigmoid(z): one exp + one reciprocal per element."""
    e = jnp.exp(-jnp.abs(z))
    e2 = e * e
    num = jnp.where(z >= 0, 1.0, e) * jnp.where(z >= 0, 1.0 - e2, e2 - 1.0)
    return num * pl.reciprocal((1.0 + e2) * (1.0 + e), approx=False)


def _stats_kernel(x_ref, halo_ref, w_ref, stats_ref, *, cfg):
    """Pass 1: conv + per-tile partial BN statistics (sum, sum-of-squares)."""
    y = _conv_from_ext(_x_ext(x_ref, halo_ref), w_ref, cfg)
    s = jnp.sum(y, axis=0, keepdims=True)                  # [1, lane_out_pad]
    ss = jnp.sum(y * y, axis=0, keepdims=True)             # [1, lane_out_pad]
    stats_ref[0, 0] = jnp.concatenate([s, ss], axis=0)     # [2, lane_out_pad]


def _apply_kernel(x_ref, halo_ref, w_ref, aff_ref, skip_ref, *, cfg):
    """Pass 2 (Cin != Cout): normalize + gate -> x_skip (x_res aliases it)."""
    y = _conv_from_ext(_x_ext(x_ref, halo_ref), w_ref, cfg)
    z = y * aff_ref[0:1, :] + aff_ref[1:2, :]
    skip_ref[0] = _gated(z).astype(skip_ref.dtype)


def _apply_kernel_res_fold(x_ref, halo_ref, w_ref, aff_ref, skip_ref, res_ref,
                           *, cfg):
    """Pass 2 (Cin == Cout, stride == 1): residual rows come from the same
    loaded tile (halo widened to 2*pad), no separate x_old HBM pass."""
    x_ext = _x_ext(x_ref, halo_ref)
    y = _conv_from_ext(x_ext, w_ref, cfg)
    skip = _gated(y * aff_ref[0:1, :] + aff_ref[1:2, :])
    skip_ref[0] = skip.astype(skip_ref.dtype)
    xo = lax.slice_in_dim(x_ext, 2 * cfg.pad, 2 * cfg.pad + cfg.rows, axis=0)
    xo = _pad_lanes(xo.astype(jnp.float32), cfg.lane_out_pad)
    res_ref[0] = (skip + xo).astype(res_ref.dtype)


def _apply_kernel_res_sep(x_ref, halo_ref, w_ref, aff_ref, xold_ref, skip_ref,
                          res_ref, *, cfg):
    """Pass 2 (Cin == Cout, strided): residual from a separate x_old input."""
    y = _conv_from_ext(_x_ext(x_ref, halo_ref), w_ref, cfg)
    skip = _gated(y * aff_ref[0:1, :] + aff_ref[1:2, :])
    skip_ref[0] = skip.astype(skip_ref.dtype)
    xo = _pad_lanes(xold_ref[0].astype(jnp.float32), cfg.lane_out_pad)
    res_ref[0] = (skip + xo).astype(res_ref.dtype)


# ----------------------------------------------------------------------------
# wrapper
# ----------------------------------------------------------------------------
@functools.partial(jax.jit, static_argnames=("kernel_size", "stride",
                                             "dilation", "dma_dtype"))
def module_wavenet_forward(x_nchw, w_kic, bias, gamma, beta, *,
                           kernel_size, stride, dilation,
                           dma_dtype=jnp.float32):
    """x_nchw: [N, Cin, H, W]; w_kic: [K, Cin, Cout]; returns (x_res, x_skip).

    `bias` is accepted for API parity but not applied: training-mode BatchNorm
    subtracts the per-channel batch mean, which exactly cancels a per-channel
    constant bias (only the un-reproduced running-stats would differ).
    `dma_dtype=jnp.bfloat16` halves input HBM traffic (f32 accumulation).
    """
    del bias
    N, Cin, H, W = x_nchw.shape
    K, _, Cout = w_kic.shape
    assert K == kernel_size
    pad = (kernel_size - 1) * dilation
    h_out = (H + 2 * pad - 1) // stride + 1

    lane_in = W * Cin
    lane_out = W * Cout
    lane_out_pad = _round_up(lane_out, _LANE)        # unmasked (lane-dense) stores
    fold_xold = (Cin == Cout and stride == 1)
    n_outs = 2 if Cin == Cout else 1
    halo = max((K - 1) * dilation, 1)                # >=1 keeps the side array non-empty
    if fold_xold:
        halo = max(halo, 2 * pad)                    # halo also covers the x_old rows

    in_itemsize = jnp.dtype(dma_dtype).itemsize
    use_blockdiag = (K * lane_in <= 4096 and
                     K * lane_in * lane_out_pad * in_itemsize <= 2 * 1024 * 1024)

    vmem_limit, tile_budget = _vmem_config()
    w_bytes = (K * lane_in * lane_out_pad if use_blockdiag
               else K * Cin * Cout) * in_itemsize
    row_tile, n_ht = _pick_row_tile(
        h_out, N, stride=stride, halo=halo, ksize=K, lane_in=lane_in,
        lane_out_pad=lane_out_pad, in_itemsize=in_itemsize, n_outs=n_outs,
        w_bytes=w_bytes, budget=tile_budget)
    h_out_pad = row_tile * n_ht

    cfg = _ConvCfg(rows=row_tile, stride=stride, dilation=dilation, ksize=K,
                   w_dim=W, cin=Cin, cout=Cout, lane_in=lane_in,
                   lane_out=lane_out, lane_out_pad=lane_out_pad, pad=pad,
                   use_blockdiag=use_blockdiag)

    # ---- folded weight: block-diagonal over w positions (or im2col weight) --
    if use_blockdiag:
        eye_w = jnp.eye(W, dtype=w_kic.dtype)
        w_mat = jnp.concatenate([jnp.kron(eye_w, w_kic[t]) for t in range(K)],
                                axis=0)                       # [K*W*Cin, W*Cout]
        if lane_out_pad > lane_out:
            w_mat = jnp.pad(w_mat, ((0, 0), (0, lane_out_pad - lane_out)))
    else:
        w_mat = w_kic.reshape(K * Cin, Cout)
    w_mat = w_mat.astype(dma_dtype)

    # ---- glue: NCHW -> folded channels-last [N, rows, W*Cin] + causal pad ---
    x_f = jnp.transpose(x_nchw, (0, 2, 3, 1)).reshape(N, H, lane_in)
    rows_total = (n_ht + 1) * row_tile * stride      # +1 block so halo view is exact
    x_pad = jnp.pad(x_f, ((0, 0), (2 * pad, rows_total - 2 * pad - H),
                          (0, 0))).astype(dma_dtype)
    # per-tile halo rows via slice + reshape (no gather, no overlapping blocks)
    x_halo = (x_pad[:, row_tile * stride:, :]
              .reshape(N, n_ht, row_tile * stride, lane_in)[:, :, :halo, :])

    x_spec = pl.BlockSpec((1, row_tile * stride, lane_in), lambda n, h: (n, h, 0))
    halo_spec = pl.BlockSpec((1, 1, halo, lane_in), lambda n, h: (n, h, 0, 0))
    w_spec = pl.BlockSpec(w_mat.shape, lambda n, h: (0, 0))
    aff_spec = pl.BlockSpec((2, lane_out_pad), lambda n, h: (0, 0))
    out_spec = pl.BlockSpec((1, row_tile, lane_out_pad), lambda n, h: (n, h, 0))

    cparams = pltpu.CompilerParams(
        dimension_semantics=("parallel", "parallel"),
        vmem_limit_bytes=vmem_limit)

    contract = K * lane_in if use_blockdiag else K * Cin
    out_cols = lane_out_pad if use_blockdiag else Cout
    mm_rows = N * h_out_pad * (1 if use_blockdiag else W)
    conv_flops = 2 * mm_rows * contract * out_cols
    x_bytes = in_itemsize * (int(x_pad.size) + int(x_halo.size)
                             + int(w_mat.size))
    gate_elems = N * h_out_pad * lane_out_pad

    # ---- pass 1: conv + per-tile partial BN statistics ----------------------
    stats = pl.pallas_call(
        functools.partial(_stats_kernel, cfg=cfg),
        grid=(N, n_ht),
        in_specs=[x_spec, halo_spec, w_spec],
        out_specs=pl.BlockSpec((1, 1, 2, lane_out_pad), lambda n, h: (n, h, 0, 0)),
        out_shape=jax.ShapeDtypeStruct((N, n_ht, 2, lane_out_pad), jnp.float32),
        compiler_params=cparams,
        cost_estimate=pl.CostEstimate(
            flops=conv_flops, transcendentals=0,
            bytes_accessed=x_bytes + 4 * N * n_ht * 2 * lane_out_pad),
    )(x_pad, x_halo, w_mat)

    # ---- tiny epilogue: global batch stats -> per-lane scale / shift --------
    stt = jnp.sum(stats, axis=(0, 1))                          # [2, lane_out_pad]
    stt = stt[:, :lane_out].reshape(2, W, Cout).sum(axis=1)    # [2, Cout]
    count = float(N * h_out * W)                               # real elements only
    mean = stt[0] / count
    var = jnp.maximum(stt[1] / count - mean * mean, 0.0)
    scale = gamma.astype(jnp.float32) * lax.rsqrt(var + EPS)
    shift = beta.astype(jnp.float32) - mean * scale
    aff = jnp.stack([jnp.tile(scale, W), jnp.tile(shift, W)])  # [2, W*Cout]
    if lane_out_pad > lane_out:
        aff = jnp.pad(aff, ((0, 0), (0, lane_out_pad - lane_out)))

    out_sds = jax.ShapeDtypeStruct((N, h_out_pad, lane_out_pad), jnp.float32)
    pass2_cost = pl.CostEstimate(
        flops=conv_flops + 16 * gate_elems, transcendentals=2 * gate_elems,
        bytes_accessed=x_bytes + 4 * (n_outs * N * h_out_pad * lane_out_pad
                                      + 2 * lane_out_pad))

    # ---- pass 2: recompute conv, normalize + gate (+ residual), store -------
    if Cin != Cout:
        skip_f = pl.pallas_call(
            functools.partial(_apply_kernel, cfg=cfg),
            grid=(N, n_ht),
            in_specs=[x_spec, halo_spec, w_spec, aff_spec],
            out_specs=out_spec, out_shape=out_sds,
            compiler_params=cparams, cost_estimate=pass2_cost,
        )(x_pad, x_halo, w_mat, aff)
        res_f = None
    elif fold_xold:
        skip_f, res_f = pl.pallas_call(
            functools.partial(_apply_kernel_res_fold, cfg=cfg),
            grid=(N, n_ht),
            in_specs=[x_spec, halo_spec, w_spec, aff_spec],
            out_specs=(out_spec, out_spec), out_shape=(out_sds, out_sds),
            compiler_params=cparams, cost_estimate=pass2_cost,
        )(x_pad, x_halo, w_mat, aff)
    else:
        if h_out_pad >= H:
            x_old = jnp.pad(x_f, ((0, 0), (0, h_out_pad - H), (0, 0)))
        else:
            x_old = x_f[:, :h_out_pad]
        x_old = x_old.astype(dma_dtype)
        xold_spec = pl.BlockSpec((1, row_tile, lane_in), lambda n, h: (n, h, 0))
        skip_f, res_f = pl.pallas_call(
            functools.partial(_apply_kernel_res_sep, cfg=cfg),
            grid=(N, n_ht),
            in_specs=[x_spec, halo_spec, w_spec, aff_spec, xold_spec],
            out_specs=(out_spec, out_spec), out_shape=(out_sds, out_sds),
            compiler_params=cparams, cost_estimate=pass2_cost,
        )(x_pad, x_halo, w_mat, aff, x_old)

    # ---- glue: un-fold lanes, crop padded rows/lanes, back to NCHW ----------
    x_skip = (skip_f[:, :h_out, :lane_out]
              .reshape(N, h_out, W, Cout).transpose(0, 3, 1, 2))
    if Cin == Cout:
        h_res = min(H, h_out)
        x_res = (res_f[:, :h_res, :lane_out]
                 .reshape(N, h_res, W, Cout).transpose(0, 3, 1, 2))
    else:
        x_res = x_skip
    return x_res, x_skip


# ----------------------------------------------------------------------------
# pure-JAX reference (mirrors the PyTorch forward)
# ----------------------------------------------------------------------------
def reference_forward(x_nchw, w_kic, bias, gamma, beta, *,
                      kernel_size, stride, dilation):
    Cout = w_kic.shape[2]
    pad = (kernel_size - 1) * dilation
    w_oihw = jnp.transpose(w_kic, (2, 1, 0))[:, :, :, None]
    y = jax.lax.conv_general_dilated(
        x_nchw, w_oihw, window_strides=(stride, 1),
        padding=((2 * pad, pad), (0, 0)),
        rhs_dilation=(dilation, 1),
        dimension_numbers=("NCHW", "OIHW", "NCHW"))
    y = y + bias[None, :, None, None]
    mean = jnp.mean(y, axis=(0, 2, 3), keepdims=True)
    var = jnp.mean((y - mean) ** 2, axis=(0, 2, 3), keepdims=True)
    y_bn = (y - mean) / jnp.sqrt(var + EPS)
    y_bn = y_bn * gamma[None, :, None, None] + beta[None, :, None, None]
    x_skip = jnp.tanh(y_bn) * jax.nn.sigmoid(y_bn)

    Cin, H = x_nchw.shape[1], x_nchw.shape[2]
    Hout = x_skip.shape[2]
    if Cin != Cout:
        x_res = x_skip
    elif H < Hout:
        x_res = x_nchw + x_skip[:, :, :H, :]
    else:
        x_res = x_skip + x_nchw[:, :, :Hout, :]
    return x_res, x_skip


if __name__ == "__main__":
    configs = [
        # (N, Cin, Cout, H, W, K, stride, dilation)
        (2, 4, 4, 16, 16, 2, 1, 1),   # residual via folded x_old (Cin==Cout, stride 1)
        (2, 4, 8, 16, 16, 2, 1, 2),   # Cin != Cout -> x_res is x_skip
        (2, 4, 4, 16, 16, 2, 2, 1),   # strided conv, separate-x_old residual path
    ]
    key = jax.random.PRNGKey(0)
    for cfg_t in configs:
        n, cin, cout, h, w, ksz, st, dl = cfg_t
        key, k_x, k_w, k_b, k_g, k_be = jax.random.split(key, 6)
        x = jax.random.normal(k_x, (n, cin, h, w), jnp.float32)
        w_kic = 0.3 * jax.random.normal(k_w, (ksz, cin, cout), jnp.float32)
        bias = 0.1 * jax.random.normal(k_b, (cout,), jnp.float32)
        gamma = 1.0 + 0.1 * jax.random.normal(k_g, (cout,), jnp.float32)
        beta = 0.1 * jax.random.normal(k_be, (cout,), jnp.float32)

        r_res, r_skip = reference_forward(
            x, w_kic, bias, gamma, beta,
            kernel_size=ksz, stride=st, dilation=dl)

        # f32 DMA path: exact module semantics.
        x_res, x_skip = module_wavenet_forward(
            x, w_kic, bias, gamma, beta,
            kernel_size=ksz, stride=st, dilation=dl)
        jax.block_until_ready((x_res, x_skip))
        assert x_skip.shape == r_skip.shape and x_res.shape == r_res.shape, cfg_t
        assert jnp.allclose(x_skip, r_skip, atol=1e-4, rtol=1e-4), cfg_t
        assert jnp.allclose(x_res, r_res, atol=1e-4, rtol=1e-4), cfg_t

        # bf16 DMA path: half the input HBM traffic, looser tolerance.
        b_res, b_skip = module_wavenet_forward(
            x, w_kic, bias, gamma, beta,
            kernel_size=ksz, stride=st, dilation=dl, dma_dtype=jnp.bfloat16)
        jax.block_until_ready((b_res, b_skip))
        assert jnp.allclose(b_skip, r_skip, atol=7.5e-2, rtol=7.5e-2), cfg_t
        assert jnp.allclose(b_res, r_res, atol=7.5e-2, rtol=7.5e-2), cfg_t

    print("KERNEL_OK")
</pallas_src>

<mosaic_0001>
module attributes {stable_mosaic.version = 11 : i64} {
  func.func @_stats_kernel(%arg0: i32, %arg1: i32, %arg2: memref<1x8x64xf32, #tpu.memory_space<vmem>>, %arg3: memref<1x1x2x64xf32, #tpu.memory_space<vmem>>, %arg4: memref<128x128xf32, #tpu.memory_space<vmem>>, %arg5: memref<1x1x2x128xf32, #tpu.memory_space<vmem>>) attributes {dimension_semantics = [#tpu.dimension_semantics<parallel>, #tpu.dimension_semantics<parallel>], iteration_bounds = array<i64: 2, 3>, scalar_prefetch = 0 : i64, scratch_operands = 0 : i64, tpu.core_type = #tpu.core_type<tc>, window_params = [{transform_indices = @transform_0, window_bounds = array<i64: 1, 8, 64>}, {transform_indices = @transform_1, window_bounds = array<i64: 1, 1, 2, 64>}, {pipeline_mode = #tpu.pipeline_mode<synchronous>, transform_indices = @transform_2, window_bounds = array<i64: 128, 128>}, {transform_indices = @transform_3, window_bounds = array<i64: 1, 1, 2, 128>}]} {
    %c0 = arith.constant 0 : index
    %c0_0 = arith.constant 0 : index
    %c0_1 = arith.constant 0 : index
    %0 = vector.load %arg2[%c0, %c0_0, %c0_1] : memref<1x8x64xf32, #tpu.memory_space<vmem>>, vector<1x8x64xf32>
    %1 = vector.shape_cast %0 : vector<1x8x64xf32> to vector<8x64xf32>
    %c0_2 = arith.constant 0 : index
    %c0_3 = arith.constant 0 : index
    %c0_4 = arith.constant 0 : index
    %c0_5 = arith.constant 0 : index
    %2 = vector.load %arg3[%c0_2, %c0_3, %c0_4, %c0_5] : memref<1x1x2x64xf32, #tpu.memory_space<vmem>>, vector<1x1x2x64xf32>
    %3 = vector.shape_cast %2 : vector<1x1x2x64xf32> to vector<2x64xf32>
    %4 = tpu.concatenate %1, %3 in 0 : vector<8x64xf32>, vector<2x64xf32> -> vector<10x64xf32>
    %5 = vector.extract_strided_slice %4 {offsets = [0, 0], sizes = [8, 64], strides = [1, 1]} : vector<10x64xf32> to vector<8x64xf32>
    %6 = vector.extract_strided_slice %4 {offsets = [1, 0], sizes = [8, 64], strides = [1, 1]} : vector<10x64xf32> to vector<8x64xf32>
    %7 = tpu.concatenate %5, %6 in 1 : vector<8x64xf32>, vector<8x64xf32> -> vector<8x128xf32>
    %c0_6 = arith.constant 0 : index
    %c0_7 = arith.constant 0 : index
    %8 = vector.load %arg4[%c0_6, %c0_7] : memref<128x128xf32, #tpu.memory_space<vmem>>, vector<128x128xf32>
    %cst = arith.constant dense<0.000000e+00> : vector<8x128xf32>
    %9 = tpu.matmul %7, %8, %cst {dimension_numbers = #tpu.dot_dimension_numbers<[1], [0], [0], [1], [0, 0, 1, 1], [], []>} : vector<8x128xf32>, vector<128x128xf32>, vector<8x128xf32> -> vector<8x128xf32>
    %cst_8 = arith.constant dense<0.000000e+00> : vector<128xf32>
    %10 = vector.multi_reduction <add>, %9, %cst_8 [0] : vector<8x128xf32> to vector<128xf32>
    %11 = vector.shape_cast %10 : vector<128xf32> to vector<1x128xf32>
    %12 = arith.mulf %9, %9 : vector<8x128xf32>
    %cst_9 = arith.constant dense<0.000000e+00> : vector<128xf32>
    %13 = vector.multi_reduction <add>, %12, %cst_9 [0] : vector<8x128xf32> to vector<128xf32>
    %14 = vector.shape_cast %13 : vector<128xf32> to vector<1x128xf32>
    %15 = tpu.concatenate %11, %14 in 0 : vector<1x128xf32>, vector<1x128xf32> -> vector<2x128xf32>
    %c0_10 = arith.constant 0 : index
    %c0_11 = arith.constant 0 : index
    %c0_12 = arith.constant 0 : index
    %c0_13 = arith.constant 0 : index
    %16 = vector.load %arg5[%c0_10, %c0_11, %c0_12, %c0_13] : memref<1x1x2x128xf32, #tpu.memory_space<vmem>>, vector<1x1x2x128xf32>
    %17 = vector.shape_cast %16 : vector<1x1x2x128xf32> to vector<2x128xf32>
    %18 = vector.shape_cast %15 : vector<2x128xf32> to vector<1x1x2x128xf32>
    tpu.vector_store %arg5[%c0_10, %c0_11, %c0_12, %c0_13], %18 {strides = array<i32>} : memref<1x1x2x128xf32, #tpu.memory_space<vmem>>, vector<1x1x2x128xf32>,
    return
  }
  func.func @transform_0(%arg0: i32, %arg1: i32) -> (i32, i32, i32) {
    %c0_i32 = arith.constant 0 : i32
    %c0_i32_0 = arith.constant 0 : i32
    return %arg0, %arg1, %c0_i32 : i32, i32, i32
  }
  func.func @transform_1(%arg0: i32, %arg1: i32) -> (i32, i32, i32, i32) {
    %c0_i32 = arith.constant 0 : i32
    %c0_i32_0 = arith.constant 0 : i32
    %c0_i32_1 = arith.constant 0 : i32
    return %arg0, %arg1, %c0_i32, %c0_i32_0 : i32, i32, i32, i32
  }
  func.func @transform_2(%arg0: i32, %arg1: i32) -> (i32, i32) {
    %c0_i32 = arith.constant 0 : i32
    %c0_i32_0 = arith.constant 0 : i32
    %c0_i32_1 = arith.constant 0 : i32
    return %c0_i32, %c0_i32_0 : i32, i32
  }
  func.func @transform_3(%arg0: i32, %arg1: i32) -> (i32, i32, i32, i32) {
    %c0_i32 = arith.constant 0 : i32
    %c0_i32_0 = arith.constant 0 : i32
    %c0_i32_1 = arith.constant 0 : i32
    return %arg0, %arg1, %c0_i32, %c0_i32_0 : i32, i32, i32, i32
  }
}

module attributes {stable_mosaic.version = 11 : i64} {
  func.func @_apply_kernel_res_fold(%arg0: i32, %arg1: i32, %arg2: memref<1x8x64xf32, #tpu.memory_space<vmem>>, %arg3: memref<1x1x2x64xf32, #tpu.memory_space<vmem>>, %arg4: memref<128x128xf32, #tpu.memory_space<vmem>>, %arg5: memref<2x128xf32, #tpu.memory_space<vmem>>, %arg6: memref<1x8x128xf32, #tpu.memory_space<vmem>>, %arg7: memref<1x8x128xf32, #tpu.memory_space<vmem>>) attributes {dimension_semantics = [#tpu.dimension_semantics<parallel>, #tpu.dimension_semantics<parallel>], iteration_bounds = array<i64: 2, 3>, scalar_prefetch = 0 : i64, scratch_operands = 0 : i64, tpu.core_type = #tpu.core_type<tc>, window_params = [{transform_indices = @transform_0, window_bounds = array<i64: 1, 8, 64>}, {transform_indices = @transform_1, window_bounds = array<i64: 1, 1, 2, 64>}, {pipeline_mode = #tpu.pipeline_mode<synchronous>, transform_indices = @transform_2, window_bounds = array<i64: 128, 128>}, {pipeline_mode = #tpu.pipeline_mode<synchronous>, transform_indices = @transform_3, window_bounds = array<i64: 2, 128>}, {transform_indices = @transform_4, window_bounds = array<i64: 1, 8, 128>}, {transform_indices = @transform_5, window_bounds = array<i64: 1, 8, 128>}]} {
    %c0 = arith.constant 0 : index
    %c0_0 = arith.constant 0 : index
    %c0_1 = arith.constant 0 : index
    %0 = vector.load %arg2[%c0, %c0_0, %c0_1] : memref<1x8x64xf32, #tpu.memory_space<vmem>>, vector<1x8x64xf32>
    %1 = vector.shape_cast %0 : vector<1x8x64xf32> to vector<8x64xf32>
    %c0_2 = arith.constant 0 : index
    %c0_3 = arith.constant 0 : index
    %c0_4 = arith.constant 0 : index
    %c0_5 = arith.constant 0 : index
    %2 = vector.load %arg3[%c0_2, %c0_3, %c0_4, %c0_5] : memref<1x1x2x64xf32, #tpu.memory_space<vmem>>, vector<1x1x2x64xf32>
    %3 = vector.shape_cast %2 : vector<1x1x2x64xf32> to vector<2x64xf32>
    %4 = tpu.concatenate %1, %3 in 0 : vector<8x64xf32>, vector<2x64xf32> -> vector<10x64xf32>
    %5 = vector.extract_strided_slice %4 {offsets = [0, 0], sizes = [8, 64], strides = [1, 1]} : vector<10x64xf32> to vector<8x64xf32>
    %6 = vector.extract_strided_slice %4 {offsets = [1, 0], sizes = [8, 64], strides = [1, 1]} : vector<10x64xf32> to vector<8x64xf32>
    %7 = tpu.concatenate %5, %6 in 1 : vector<8x64xf32>, vector<8x64xf32> -> vector<8x128xf32>
    %c0_6 = arith.constant 0 : index
    %c0_7 = arith.constant 0 : index
    %8 = vector.load %arg4[%c0_6, %c0_7] : memref<128x128xf32, #tpu.memory_space<vmem>>, vector<128x128xf32>
    %cst = arith.constant dense<0.000000e+00> : vector<8x128xf32>
    %9 = tpu.matmul %7, %8, %cst {dimension_numbers = #tpu.dot_dimension_numbers<[1], [0], [0], [1], [0, 0, 1, 1], [], []>} : vector<8x128xf32>, vector<128x128xf32>, vector<8x128xf32> -> vector<8x128xf32>
    %c0_8 = arith.constant 0 : index
    %c0_9 = arith.constant 0 : index
    %10 = vector.load %arg5[%c0_8, %c0_9] : memref<2x128xf32, #tpu.memory_space<vmem>>, vector<1x128xf32>
    %11 = vector.broadcast %10 : vector<1x128xf32> to vector<8x128xf32>
    %12 = arith.mulf %9, %11 : vector<8x128xf32>
    %c1 = arith.constant 1 : index
    %c0_10 = arith.constant 0 : index
    %13 = vector.load %arg5[%c1, %c0_10] : memref<2x128xf32, #tpu.memory_space<vmem>>, vector<1x128xf32>
    %14 = vector.broadcast %13 : vector<1x128xf32> to vector<8x128xf32>
    %15 = arith.addf %12, %14 : vector<8x128xf32>
    %16 = math.absf %15 : vector<8x128xf32>
    %cst_11 = arith.constant 0.000000e+00 : f32
    %17 = vector.broadcast %cst_11 : f32 to vector<8x128xf32>
    %18 = arith.subf %17, %16 : vector<8x128xf32>
    %19 = math.exp %18 : vector<8x128xf32>
    %20 = arith.mulf %19, %19 : vector<8x128xf32>
    %cst_12 = arith.constant 0.000000e+00 : f32
    %21 = vector.broadcast %cst_12 : f32 to vector<8x128xf32>
    %22 = arith.cmpf oge, %15, %21 : vector<8x128xf32>
    %cst_13 = arith.constant 1.000000e+00 : f32
    %23 = vector.broadcast %cst_13 : f32 to vector<8x128xf32>
    %24 = arith.select %22, %23, %19 : vector<8x128xi1>, vector<8x128xf32>
    %cst_14 = arith.constant 0.000000e+00 : f32
    %25 = vector.broadcast %cst_14 : f32 to vector<8x128xf32>
    %26 = arith.cmpf oge, %15, %25 : vector<8x128xf32>
    %cst_15 = arith.constant 1.000000e+00 : f32
    %27 = vector.broadcast %cst_15 : f32 to vector<8x128xf32>
    %28 = arith.subf %27, %20 : vector<8x128xf32>
    %cst_16 = arith.constant 1.000000e+00 : f32
    %29 = vector.broadcast %cst_16 : f32 to vector<8x128xf32>
    %30 = arith.subf %20, %29 : vector<8x128xf32>
    %31 = arith.select %26, %28, %30 : vector<8x128xi1>, vector<8x128xf32>
    %32 = arith.mulf %24, %31 : vector<8x128xf32>
    %cst_17 = arith.constant 1.000000e+00 : f32
    %33 = vector.broadcast %cst_17 : f32 to vector<8x128xf32>
    %34 = arith.addf %33, %20 : vector<8x128xf32>
    %cst_18 = arith.constant 1.000000e+00 : f32
    %35 = vector.broadcast %cst_18 : f32 to vector<8x128xf32>
    %36 = arith.addf %35, %19 : vector<8x128xf32>
    %37 = arith.mulf %34, %36 : vector<8x128xf32>
    %38 = tpu.reciprocal %37 : vector<8x128xf32> -> vector<8x128xf32>
    %39 = arith.mulf %32, %38 : vector<8x128xf32>
    %c0_19 = arith.constant 0 : index
    %c0_20 = arith.constant 0 : index
    %c0_21 = arith.constant 0 : index
    %40 = vector.load %arg6[%c0_19, %c0_20, %c0_21] : memref<1x8x128xf32, #tpu.memory_space<vmem>>, vector<1x8x128xf32>
    %41 = vector.shape_cast %40 : vector<1x8x128xf32> to vector<8x128xf32>
    %42 = vector.shape_cast %39 : vector<8x128xf32> to vector<1x8x128xf32>
    tpu.vector_store %arg6[%c0_19, %c0_20, %c0_21], %42 {strides = array<i32>} : memref<1x8x128xf32, #tpu.memory_space<vmem>>, vector<1x8x128xf32>,
    %43 = vector.extract_strided_slice %4 {offsets = [2, 0], sizes = [8, 64], strides = [1, 1]} : vector<10x64xf32> to vector<8x64xf32>
    %cst_22 = arith.constant 0.000000e+00 : f32
    %44 = vector.broadcast %cst_22 : f32 to vector<8x64xf32>
    %45 = tpu.concatenate %43, %44 in 1 : vector<8x64xf32>, vector<8x64xf32> -> vector<8x128xf32>
    %46 = arith.addf %39, %45 : vector<8x128xf32>
    %c0_23 = arith.constant 0 : index
    %c0_24 = arith.constant 0 : index
    %c0_25 = arith.constant 0 : index
    %47 = vector.load %arg7[%c0_23, %c0_24, %c0_25] : memref<1x8x128xf32, #tpu.memory_space<vmem>>, vector<1x8x128xf32>
    %48 = vector.shape_cast %47 : vector<1x8x128xf32> to vector<8x128xf32>
    %49 = vector.shape_cast %46 : vector<8x128xf32> to vector<1x8x128xf32>
    tpu.vector_store %arg7[%c0_23, %c0_24, %c0_25], %49 {strides = array<i32>} : memref<1x8x128xf32, #tpu.memory_space<vmem>>, vector<1x8x128xf32>,
    return
  }
  func.func @transform_0(%arg0: i32, %arg1: i32) -> (i32, i32, i32) {
    %c0_i32 = arith.constant 0 : i32
    %c0_i32_0 = arith.constant 0 : i32
    return %arg0, %arg1, %c0_i32 : i32, i32, i32
  }
  func.func @transform_1(%arg0: i32, %arg1: i32) -> (i32, i32, i32, i32) {
    %c0_i32 = arith.constant 0 : i32
    %c0_i32_0 = arith.constant 0 : i32
    %c0_i32_1 = arith.constant 0 : i32
    return %arg0, %arg1, %c0_i32, %c0_i32_0 : i32, i32, i32, i32
  }
  func.func @transform_2(%arg0: i32, %arg1: i32) -> (i32, i32) {
    %c0_i32 = arith.constant 0 : i32
    %c0_i32_0 = arith.constant 0 : i32
    %c0_i32_1 = arith.constant 0 : i32
    return %c0_i32, %c0_i32_0 : i32, i32
  }
  func.func @transform_3(%arg0: i32, %arg1: i32) -> (i32, i32) {
    %c0_i32 = arith.constant 0 : i32
    %c0_i32_0 = arith.constant 0 : i32
    %c0_i32_1 = arith.constant 0 : i32
    return %c0_i32, %c0_i32_0 : i32, i32
  }
  func.func @transform_4(%arg0: i32, %arg1: i32) -> (i32, i32, i32) {
    %c0_i32 = arith.constant 0 : i32
    %c0_i32_0 = arith.constant 0 : i32
    return %arg0, %arg1, %c0_i32 : i32, i32, i32
  }
  func.func @transform_5(%arg0: i32, %arg1: i32) -> (i32, i32, i32) {
    %c0_i32 = arith.constant 0 : i32
    %c0_i32_0 = arith.constant 0 : i32
    return %arg0, %arg1, %c0_i32 : i32, i32, i32
  }
}

</mosaic_0001>

<llo_original>
// kernel: tile.13
$region0: #{tile.13}
  #allocation0 [shape = 's32[1]{0}', space=sflag, size = 0x4, scoped, tag = 'scoped memory for tile.13']
  %s0 = inlined_call_operand.vmem [shape: f32[4], index: 0, kind: input, shape index: {}]
  %s1 = inlined_call_operand.vmem [shape: f32[16,4], index: 1, kind: output, shape index: {}]
  // Predicated region
  $region2: #{tile.13} parent=0 // pred_check
    _
  $region3: #{tile.13} parent=0 // pred_check_branch
    %3 = sbr.rel (0) target = $region5
  $region4: #{tile.13} parent=0 // pred_region
    _
  $region5: #{tile.13} parent=0 // pred_fallthru
    _
  %v4 = vld [vmem:[%s0] ss:$0 sm:$0xff]
  %5 = vst [vmem:[%s1] sm:$0xff] %v4
  %s6 = scalar_lea.vmem %s1, 8
  %7 = vst [vmem:[%s6] sm:$0xff] %v4

// kernel: tile.18
$region0: #{tile.18}
  %s0 = inlined_call_operand.vmem [shape: f32[16,4], index: 0, kind: input, shape index: {}]
  %s1 = inlined_call_operand.vmem [shape: f32[1,64], index: 1, kind: output, shape index: {}]
  $region1: #{tile.18} parent=0
    #allocation0 [shape = 'u8[4096]{0}', space=vmem, size = 0x1000, scoped, tag = 'scoped mem for output reshape']
    %v2 = vld [vmem:[%s0] sm:$0x1]
    %vm3 = vcmask 31744
    %4 = vst.msk [vmem:[#allocation0] sm:$0x1] %vm3, %v2
    %s5 = scalar_lea.vmem %s0, 15
    %v6 = vld [vmem:[%s5] sm:$0x1]
    %7 = vrot.lane.b32.xlu0 %v6, 60
    %v8 = vpop.permute.xlu0 %7
    %vm9 = vcmask 523744
    %10 = vst.msk [vmem:[#allocation0] sm:$0x1] %vm9, %v8
    %s11 = scalar_lea.vmem %s0, 14
    %v12 = vld [vmem:[%s11] sm:$0x1]
    %13 = vrot.lane.b32.xlu0 %v12, 56
    %v14 = vpop.permute.xlu0 %13
    %vm15 = vcmask 490944
    %16 = vst.msk [vmem:[#allocation0] sm:$0x1] %vm15, %v14
    %s17 = scalar_lea.vmem %s0, 13
    %v18 = vld [vmem:[%s17] sm:$0x1]
    %19 = vrot.lane.b32.xlu0 %v18, 52
    %v20 = vpop.permute.xlu0 %19
    %vm21 = vcmask 458144
    %22 = vst.msk [vmem:[#allocation0] sm:$0x1] %vm21, %v20
    %s23 = scalar_lea.vmem %s0, 12
    %v24 = vld [vmem:[%s23] sm:$0x1]
    %25 = vrot.lane.b32.xlu0 %v24, 48
    %v26 = vpop.permute.xlu0 %25
    %vm27 = vcmask 425344
    %28 = vst.msk [vmem:[#allocation0] sm:$0x1] %vm27, %v26
    %s29 = scalar_lea.vmem %s0, 11
    %v30 = vld [vmem:[%s29] sm:$0x1]
    %31 = vrot.lane.b32.xlu0 %v30, 44
    %v32 = vpop.permute.xlu0 %31
    %vm33 = vcmask 392544
    %34 = vst.msk [vmem:[#allocation0] sm:$0x1] %vm33, %v32
    %s35 = scalar_lea.vmem %s0, 10
    %v36 = vld [vmem:[%s35] sm:$0x1]
    %37 = vrot.lane.b32.xlu0 %v36, 40
    %v38 = vpop.permute.xlu0 %37
    %vm39 = vcmask 359744
    %40 = vst.msk [vmem:[#allocation0] sm:$0x1] %vm39, %v38
    %s41 = scalar_lea.vmem %s0, 9
    %v42 = vld [vmem:[%s41] sm:$0x1]
    %43 = vrot.lane.b32.xlu0 %v42, 36
    %v44 = vpop.permute.xlu0 %43
    %vm45 = vcmask 326944
    %46 = vst.msk [vmem:[#allocation0] sm:$0x1] %vm45, %v44
    %s47 = scalar_lea.vmem %s0, 8
    %v48 = vld [vmem:[%s47] sm:$0x1]
    %49 = vrot.lane.b32.xlu0 %v48, 32
    %v50 = vpop.permute.xlu0 %49
    %vm51 = vcmask 294144
    %52 = vst.msk [vmem:[#allocation0] sm:$0x1] %vm51, %v50
    %s53 = scalar_lea.vmem %s0, 7
    %v54 = vld [vmem:[%s53] sm:$0x1]
    %55 = vrot.lane.b32.xlu0 %v54, 28
    %v56 = vpop.permute.xlu0 %55
    %vm57 = vcmask 261344
    %58 = vst.msk [vmem:[#allocation0] sm:$0x1] %vm57, %v56
    %s59 = scalar_lea.vmem %s0, 6
    %v60 = vld [vmem:[%s59] sm:$0x1]
    %61 = vrot.lane.b32.xlu0 %v60, 24
    %v62 = vpop.permute.xlu0 %61
    %vm63 = vcmask 228544
    %64 = vst.msk [vmem:[#allocation0] sm:$0x1] %vm63, %v62
    %s65 = scalar_lea.vmem %s0, 5
    %v66 = vld [vmem:[%s65] sm:$0x1]
    %67 = vrot.lane.b32.xlu0 %v66, 20
    %v68 = vpop.permute.xlu0 %67
    %vm69 = vcmask 195744
    %70 = vst.msk [vmem:[#allocation0] sm:$0x1] %vm69, %v68
    %s71 = scalar_lea.vmem %s0, 4
    %v72 = vld [vmem:[%s71] sm:$0x1]
    %73 = vrot.lane.b32.xlu0 %v72, 16
    %v74 = vpop.permute.xlu0 %73
    %vm75 = vcmask 162944
    %76 = vst.msk [vmem:[#allocation0] sm:$0x1] %vm75, %v74
    %s77 = scalar_lea.vmem %s0, 3
    %v78 = vld [vmem:[%s77] sm:$0x1]
    %79 = vrot.lane.b32.xlu0 %v78, 12
    %v80 = vpop.permute.xlu0 %79
    %vm81 = vcmask 130144
    %82 = vst.msk [vmem:[#allocation0] sm:$0x1] %vm81, %v80
    %s83 = scalar_lea.vmem %s0, 2
    %v84 = vld [vmem:[%s83] sm:$0x1]
    %85 = vrot.lane.b32.xlu0 %v84, 8
    %v86 = vpop.permute.xlu0 %85
    %vm87 = vcmask 97344
    %88 = vst.msk [vmem:[#allocation0] sm:$0x1] %vm87, %v86
    %s89 = scalar_lea.vmem %s0, 1
    %v90 = vld [vmem:[%s89] sm:$0x1]
    %91 = vrot.lane.b32.xlu0 %v90, 4
    %v92 = vpop.permute.xlu0 %91
    %vm93 = vcmask 64544
    %94 = vst.msk [vmem:[#allocation0] sm:$0x1] %vm93, %v92
    %s96 = sshllo.u32 0, 1
    %v98 = vld [vmem:[#allocation0] sm:%s96]
    %s99 = sshllo.u32 0, 1
    %100 = vst [vmem:[%s1] sm:%s99] %v98

// kernel: module_wavenet_forward.2
$region0: #{module_wavenet_forward.2}
  #allocation0 [shape = 'u32[]', space=smem, size = 0x4, offset = 0x4, fixed_abs, tag = 'smem constant byte address 0x4 - core index']
  #allocation1 [shape = 'u32[144,128]{1,0:T(1,128)}', space=vmem, size = 0x12000, scoped, tag = 'internal scratch']
  %s0 = inlined_call_operand.vmem [shape: f32[2,32,64], index: 0, kind: input, shape index: {}]
  %s1 = inlined_call_operand.vmem [shape: f32[2,3,2,64], index: 1, kind: input, shape index: {}]
  %s2 = inlined_call_operand.vmem [shape: f32[128,128], index: 2, kind: input, shape index: {}]
  %s3 = inlined_call_operand.vmem [shape: f32[2,3,2,128], index: 3, kind: output, shape index: {}]
  %s4 = sld [smem:[#allocation0]]
  $region45: #{module_wavenet_forward.2} parent=0
    _
  %s6 = ssub.s32 1, %s4
  %s7 = scalar_select 0, %s6, %s4
  loop: start=0, step=1, limit=8
  $region2: #{module_wavenet_forward.2} parent=0 // loop_pre_header
    _
  $region3: #{module_wavenet_forward.2} parent=0 // loop_header
    %s9 = sphi 0, %s13
    %p10 = scmp.ge.s32.totalorder %s9, 8
    %s16 = sphi 0, %s28
    %s17 = sphi 0, %s24
    %s18 = sphi 0, %s16
    %s19 = sphi 0, %s17
    %s20 = sphi 0, %s18
    %s21 = sphi 0, %s19
    %s33 = sphi 0, %s35
    %s36 = sphi 0, %s33
    %s37 = sphi 0, %s36
    %s53 = sphi 0, %s37
    %s61 = sphi 0, %s63
    %s64 = sphi 0, %s61
    %s65 = sphi 0, %s64
    %s81 = sphi 0, %s65
    %s85 = sphi 0, %s85
    %s87 = sphi 0, %s85
    %s88 = sphi 0, %s87
    %s102 = sphi 0, %s88
    %s110 = sphi 0, %s112
    %s113 = sphi 0, %s110
    %s114 = sphi 0, %s113
    %s130 = sphi 0, %s114
  $region4: #{module_wavenet_forward.2} parent=0 // loop_header_branch
    %12 = sbr.rel (%p10) target = $region8
  $region5: #{module_wavenet_forward.2} parent=0 // loop_body
    %s14 = ssub.s32 %s9, 1
    %s15 = ssub.s32 %s9, 2
    %s22 = sadd.s32 1, %s17
    %p23 = scmp.ge.s32.totalorder %s22, 3
    %s24 = scalar_select %p23, 0, %s22
    %s25 = sadd.s32 1, %s16
    %s26 = scalar_select %p23, %s25, %s16
    %p27 = scmp.ge.s32.totalorder %s26, 2
    %s28 = scalar_select %p27, 0, %s26
    %s29 = ssub.s32 %s16, %s28
    %s30 = ssub.s32 %s17, %s24
    %s31 = sor.u32 %s29, %s30
    %p32 = scmp.eq.s32.totalorder %s31, 0
    %s34 = sadd.s32 %s33, 1
    %s35 = scalar_select %p32, %s33, %s34
    %p38 = pneg %p32
    %p39 = scmp.eq.s32.totalorder %s9, 5
    %p40 = por %p38, %p39
    %p41 = scmp.ne.s32.totalorder %s33, %s36
    %p42 = scmp.eq.s32.totalorder %s9, 0
    %p43 = por %p41, %p42
    %p44 = scmp.ne.s32.totalorder %s33, %s36
    %p45 = scmp.eq.s32.totalorder %s14, 5
    %p46 = por %p44, %p45
    %p47 = scmp.ne.s32.totalorder %s36, %s37
    %p48 = scmp.eq.s32.totalorder %s14, 0
    %p49 = por %p47, %p48
    %p50 = scmp.ne.s32.totalorder %s36, %s37
    %p51 = scmp.eq.s32.totalorder %s15, 5
    %p52 = por %p50, %p51
    %p54 = scmp.ne.s32.totalorder %s37, %s53
    %p55 = scmp.eq.s32.totalorder %s15, 0
    %p56 = por %p54, %p55
    %s57 = ssub.s32 %s16, %s28
    %s58 = ssub.s32 %s17, %s24
    %s59 = sor.u32 %s57, %s58
    %p60 = scmp.eq.s32.totalorder %s59, 0
    %s62 = sadd.s32 %s61, 1
    %s63 = scalar_select %p60, %s61, %s62
    %p66 = pneg %p60
    %p67 = scmp.eq.s32.totalorder %s9, 5
    %p68 = por %p66, %p67
    %p69 = scmp.ne.s32.totalorder %s61, %s64
    %p70 = scmp.eq.s32.totalorder %s9, 0
    %p71 = por %p69, %p70
    %p72 = scmp.ne.s32.totalorder %s61, %s64
    %p73 = scmp.eq.s32.totalorder %s14, 5
    %p74 = por %p72, %p73
    %p75 = scmp.ne.s32.totalorder %s64, %s65
    %p76 = scmp.eq.s32.totalorder %s14, 0
    %p77 = por %p75, %p76
    %p78 = scmp.ne.s32.totalorder %s64, %s65
    %p79 = scmp.eq.s32.totalorder %s15, 5
    %p80 = por %p78, %p79
    %p82 = scmp.ne.s32.totalorder %s65, %s81
    %p83 = scmp.eq.s32.totalorder %s15, 0
    %p84 = por %p82, %p83
    %s86 = sadd.s32 %s85, 1
    %p89 = scmp.eq.s32.totalorder %s9, 5
    %p90 = scmp.ne.s32.totalorder %s85, %s87
    %p91 = scmp.eq.s32.totalorder %s9, 0
    %p92 = por %p90, %p91
    %p93 = scmp.ne.s32.totalorder %s85, %s87
    %p94 = scmp.eq.s32.totalorder %s14, 5
    %p95 = por %p93, %p94
    %p96 = scmp.ne.s32.totalorder %s87, %s88
    %p97 = scmp.eq.s32.totalorder %s14, 0
    %p98 = por %p96, %p97
    %p99 = scmp.ne.s32.totalorder %s87, %s88
    %p100 = scmp.eq.s32.totalorder %s15, 5
    %p101 = por %p99, %p100
    %p103 = scmp.ne.s32.totalorder %s88, %s102
    %p104 = scmp.eq.s32.totalorder %s15, 0
    %p105 = por %p103, %p104
    %s106 = ssub.s32 %s16, %s28
    %s107 = ssub.s32 %s17, %s24
    %s108 = sor.u32 %s106, %s107
    %p109 = scmp.eq.s32.totalorder %s108, 0
    %s111 = sadd.s32 %s110, 1
    %s112 = scalar_select %p109, %s110, %s111
    %p115 = pneg %p109
    %p116 = scmp.eq.s32.totalorder %s9, 5
    %p117 = por %p115, %p116
    %p118 = scmp.ne.s32.totalorder %s110, %s113
    %p119 = scmp.eq.s32.totalorder %s9, 0
    %p120 = por %p118, %p119
    %p121 = scmp.ne.s32.totalorder %s110, %s113
    %p122 = scmp.eq.s32.totalorder %s14, 5
    %p123 = por %p121, %p122
    %p124 = scmp.ne.s32.totalorder %s113, %s114
    %p125 = scmp.eq.s32.totalorder %s14, 0
    %p126 = por %p124, %p125
    %p127 = scmp.ne.s32.totalorder %s113, %s114
    %p128 = scmp.eq.s32.totalorder %s15, 5
    %p129 = por %p127, %p128
    %p131 = scmp.ne.s32.totalorder %s114, %s130
    %p132 = scmp.eq.s32.totalorder %s15, 0
    %p133 = por %p131, %p132
    %p134 = scmp.le.s32.totalorder 1, %s9
    %p135 = scmp.lt.s32.totalorder %s9, 7
    %p136 = pnand %p134, %p135
    %p137 = pneg %p136
    // Predicated region
    $region9: #{module_wavenet_forward.2} parent=5 // pred_check
      _
    $region10: #{module_wavenet_forward.2} parent=5 // pred_check_branch
      %139 = sbr.rel (%p136) target = $region12
    $region11: #{module_wavenet_forward.2} parent=5 // pred_region
      %s140 = ssub.s32 %s9, 1
      // Predicated region
      $region13: #{module_wavenet_forward.2} parent=11 // pred_check
        %p141 = pneg %p98
      $region14: #{module_wavenet_forward.2} parent=11 // pred_check_branch
        %143 = sbr.rel (%p141) target = $region16
      $region15: #{module_wavenet_forward.2} parent=11 // pred_region
        _
      $region16: #{module_wavenet_forward.2} parent=11 // pred_fallthru
        _
    $region12: #{module_wavenet_forward.2} parent=5 // pred_fallthru
      _
    %p144 = scmp.lt.s32.totalorder %s9, 6
    // Predicated region
    $region17: #{module_wavenet_forward.2} parent=5 // pred_check
      %p145 = pneg %p144
    $region18: #{module_wavenet_forward.2} parent=5 // pred_check_branch
      %147 = sbr.rel (%p145) target = $region20
    $region19: #{module_wavenet_forward.2} parent=5 // pred_region
      // Predicated region
      $region21: #{module_wavenet_forward.2} parent=19 // pred_check
        %p148 = pneg %p43
      $region22: #{module_wavenet_forward.2} parent=19 // pred_check_branch
        %150 = sbr.rel (%p148) target = $region24
      $region23: #{module_wavenet_forward.2} parent=19 // pred_region
        %p151 = scmp.lt.s32.totalorder %s16, 1
        %s152 = scalar_select %p151, %s16, 1
        %p153 = scmp.lt.s32.totalorder %s17, 3
        %s154 = scalar_select %p153, %s17, 3
        %s155 = smul.addr %s152, 4
        %s156 = sadd.s32 %s154, %s155
        %s157 = smul.addr %s156, 8
        %s158 = scalar_lea.vmem %s0, %s157
      $region24: #{module_wavenet_forward.2} parent=19 // pred_fallthru
        _
      // Predicated region
      $region25: #{module_wavenet_forward.2} parent=19 // pred_check
        %p159 = pneg %p71
      $region26: #{module_wavenet_forward.2} parent=19 // pred_check_branch
        %161 = sbr.rel (%p159) target = $region28
      $region27: #{module_wavenet_forward.2} parent=19 // pred_region
        %p162 = scmp.lt.s32.totalorder %s16, 1
        %s163 = scalar_select %p162, %s16, 1
        %p164 = scmp.lt.s32.totalorder %s17, 2
        %s165 = scalar_select %p164, %s17, 2
        %s166 = smul.addr %s163, 3
        %s167 = sadd.s32 %s165, %s166
        %s168 = smul.addr %s167, 2
        %s169 = scalar_lea.vmem %s1, %s168
      $region28: #{module_wavenet_forward.2} parent=19 // pred_fallthru
        _
    $region20: #{module_wavenet_forward.2} parent=5 // pred_fallthru
      _
    %p170 = scmp.le.s32.totalorder 1, %s9
    %p171 = scmp.lt.s32.totalorder %s9, 7
    %p172 = pnand %p170, %p171
    %p173 = pneg %p172
    // Predicated region
    $region29: #{module_wavenet_forward.2} parent=5 // pred_check
      _
    $region30: #{module_wavenet_forward.2} parent=5 // pred_check_branch
      %175 = sbr.rel (%p172) target = $region32
    $region31: #{module_wavenet_forward.2} parent=5 // pred_region
      %s176 = ssub.s32 %s9, 1
      %p177 = scmp.lt.s32.totalorder %s18, 1
      %s178 = scalar_select %p177, %s18, 1
      %p179 = scmp.lt.s32.totalorder %s19, 3
      %s180 = scalar_select %p179, %s19, 3
      %s181 = smul.addr %s178, 4
      %s182 = sadd.s32 %s180, %s181
      %s183 = smul.addr %s182, 8
      %s184 = scalar_lea.vmem %s0, %s183
      %p185 = pneg %p49
      %p186 = pneg %p46
      %p187 = scmp.lt.s32.totalorder %s18, 1
      %s188 = scalar_select %p187, %s18, 1
      %p189 = scmp.lt.s32.totalorder %s19, 2
      %s190 = scalar_select %p189, %s19, 2
      %s191 = smul.addr %s188, 3
      %s192 = sadd.s32 %s190, %s191
      %s193 = smul.addr %s192, 2
      %s194 = scalar_lea.vmem %s1, %s193
      %p195 = pneg %p77
      %p196 = pneg %p74
      %p197 = pneg %p98
      %p198 = pneg %p95
      %p199 = pneg %p126
      %p200 = pneg %p123
      %p201 = scmp.lt.s32.totalorder %s18, 1
      %s202 = scalar_select %p201, %s18, 1
      %p203 = scmp.lt.s32.totalorder %s19, 2
      %s204 = scalar_select %p203, %s19, 2
      %s205 = smul.addr %s202, 3
      %s206 = sadd.s32 %s204, %s205
      %s207 = smul.addr %s206, 2
      %s208 = scalar_lea.vmem %s3, %s207
      %p209 = scmp.lt.s32.totalorder %s18, 1
      %s210 = scalar_select %p209, %s18, 1
      %p211 = scmp.lt.s32.totalorder %s19, 3
      %s212 = scalar_select %p211, %s19, 3
      %s213 = smul.addr %s210, 4
      %s214 = sadd.s32 %s212, %s213
      %s215 = smul.addr %s214, 8
      %s216 = scalar_lea.vmem %s0, %s215
      %p217 = scmp.lt.s32.totalorder %s18, 1
      %s218 = scalar_select %p217, %s18, 1
      %p219 = scmp.lt.s32.totalorder %s19, 2
      %s220 = scalar_select %p219, %s19, 2
      %s221 = smul.addr %s218, 3
      %s222 = sadd.s32 %s220, %s221
      %s223 = smul.addr %s222, 2
      %s224 = scalar_lea.vmem %s1, %s223
      %p225 = scmp.lt.s32.totalorder %s18, 1
      %s226 = scalar_select %p225, %s18, 1
      %p227 = scmp.lt.s32.totalorder %s19, 2
      %s228 = scalar_select %p227, %s19, 2
      %s229 = smul.addr %s226, 3
      %s230 = sadd.s32 %s228, %s229
      %s231 = smul.addr %s230, 2
      %s232 = scalar_lea.vmem %s3, %s231
      %v233 = vld [vmem:[%s216] sm:$0xff]
      %v234 = vld [vmem:[%s224] sm:$0x3]
      %vm237 = vcmask 1046528
      %v238 = vrot.slane %v233, 1
      %v239 = vrot.slane %v234, 1
      %v240 = vsel %vm237, %v238, %v239
      %241 = vrot.lane.b32.xlu0 %v240, 64
      %v242 = vpop.permute.xlu0 %241
      %vm244 = vcmask 523264
      %v245 = vsel %vm244, %v233, %v242
      %v246 = vld [vmem:[%s2] sm:$0xff]
      %v247 = vld [vmem:[%s2 + $0x8] sm:$0xff]
      %v248 = vld [vmem:[%s2 + $0x10] sm:$0xff]
      %v249 = vld [vmem:[%s2 + $0x18] sm:$0xff]
      %v250 = vld [vmem:[%s2 + $0x20] sm:$0xff]
      %v251 = vld [vmem:[%s2 + $0x28] sm:$0xff]
      %v252 = vld [vmem:[%s2 + $0x30] sm:$0xff]
      %v253 = vld [vmem:[%s2 + $0x38] sm:$0xff]
      %v254 = vld [vmem:[%s2 + $0x40] sm:$0xff]
      %v255 = vld [vmem:[%s2 + $0x48] sm:$0xff]
      %v256 = vld [vmem:[%s2 + $0x50] sm:$0xff]
      %v257 = vld [vmem:[%s2 + $0x58] sm:$0xff]
      %v258 = vld [vmem:[%s2 + $0x60] sm:$0xff]
      %v259 = vld [vmem:[%s2 + $0x68] sm:$0xff]
      %v260 = vld [vmem:[%s2 + $0x70] sm:$0xff]
      %v261 = vld [vmem:[%s2 + $0x78] sm:$0xff]
      %262 = vmatprep.subr.mxu0 0.0
      %263 = vmatpush1.msra.mxu0 %v246
      %264 = vmatprep.subr.mxu0 0.0
      %265 = vmatpush1.msra.mxu0 %v247
      %266 = vmatprep.subr.mxu0 0.0
      %267 = vmatpush1.msra.mxu0 %v248
      %268 = vmatprep.subr.mxu0 0.0
      %269 = vmatpush1.msra.mxu0 %v249
      %270 = vmatprep.subr.mxu0 0.0
      %271 = vmatpush1.msra.mxu0 %v250
      %272 = vmatprep.subr.mxu0 0.0
      %273 = vmatpush1.msra.mxu0 %v251
      %274 = vmatprep.subr.mxu0 0.0
      %275 = vmatpush1.msra.mxu0 %v252
      %276 = vmatprep.subr.mxu0 0.0
      %277 = vmatpush1.msra.mxu0 %v253
      %278 = vmatprep.subr.mxu0 0.0
      %279 = vmatpush1.msra.mxu0 %v254
      %280 = vmatprep.subr.mxu0 0.0
      %281 = vmatpush1.msra.mxu0 %v255
      %282 = vmatprep.subr.mxu0 0.0
      %283 = vmatpush1.msra.mxu0 %v256
      %284 = vmatprep.subr.mxu0 0.0
      %285 = vmatpush1.msra.mxu0 %v257
      %286 = vmatprep.subr.mxu0 0.0
      %287 = vmatpush1.msra.mxu0 %v258
      %288 = vmatprep.subr.mxu0 0.0
      %289 = vmatpush1.msra.mxu0 %v259
      %290 = vmatprep.subr.mxu0 0.0
      %291 = vmatpush1.msra.mxu0 %v260
      %292 = vmatprep.subr.mxu0 0.0
      %293 = vmatpush1.msra.mxu0 %v261
      %294 = vmatprep.subr.mxu0 0.0
      %295 = vmatpush1.msra.mxu0 0.0
      %296 = vmatprep.subr.mxu0 0.0
      %297 = vmatpush1.msra.mxu0 0.0
      %298 = vmatprep.subr.mxu0 0.0
      %299 = vmatpush1.msra.mxu0 0.0
      %300 = vmatprep.subr.mxu0 0.0
      %301 = vmatpush1.msra.mxu0 0.0
      %302 = vmatprep.subr.mxu0 0.0
      %303 = vmatpush1.msra.mxu0 0.0
      %304 = vmatprep.subr.mxu0 0.0
      %305 = vmatpush1.msra.mxu0 0.0
      %306 = vmatprep.subr.mxu0 0.0
      %307 = vmatpush1.msra.mxu0 0.0
      %308 = vmatprep.subr.mxu0 0.0
      %309 = vmatpush1.msra.mxu0 0.0
      %310 = vmatprep.subr.mxu0 0.0
      %311 = vmatpush1.msra.mxu0 0.0
      %312 = vmatprep.subr.mxu0 0.0
      %313 = vmatpush1.msra.mxu0 0.0
      %314 = vmatprep.subr.mxu0 0.0
      %315 = vmatpush1.msra.mxu0 0.0
      %316 = vmatprep.subr.mxu0 0.0
      %317 = vmatpush1.msra.mxu0 0.0
      %318 = vmatprep.subr.mxu0 0.0
      %319 = vmatpush1.msra.mxu0 0.0
      %320 = vmatprep.subr.mxu0 0.0
      %321 = vmatpush1.msra.mxu0 0.0
      %322 = vmatprep.subr.mxu0 0.0
      %323 = vmatpush1.msra.mxu0 0.0
      %324 = vmatprep.subr.mxu0 0.0
      %325 = vmatpush1.msra.mxu0 0.0
      %326 = vmatprep.mubr.f32.mxu0 0.0
      %327 = vmatmul.mubr.f32.gmra.mrb[0].mxu0 %v245
      %v328 = vpop.f32.mrb[0].mxu0
      %v329 = vadd.f32 0.0, %v328
      %v330 = vpop.f32.mrb[0].mxu0
      %331 = vdwg.mxu0
      %v332 = vrot.slane %v329, 4
      %v333 = vadd.f32 %v329, %v332
      %v334 = vrot.slane %v333, 2
      %v335 = vadd.f32 %v333, %v334
      %v336 = vrot.slane %v335, 1
      %v337 = vadd.f32 %v335, %v336
      %v338 = vmul.f32 %v329, %v329
      %v339 = vrot.slane %v338, 4
      %v340 = vadd.f32 %v338, %v339
      %v341 = vrot.slane %v340, 2
      %v342 = vadd.f32 %v340, %v341
      %v343 = vrot.slane %v342, 1
      %v344 = vadd.f32 %v342, %v343
      %vm345 = vcmask 1040384
      %v346 = vsel %vm345, %v337, %v344
      %347 = vst [vmem:[%s232] sm:$0x3] %v346
      %p348 = scmp.lt.s32.totalorder %s18, 1
      %s349 = scalar_select %p348, %s18, 1
      %p350 = scmp.lt.s32.totalorder %s19, 2
      %s351 = scalar_select %p350, %s19, 2
      %s352 = smul.addr %s349, 3
      %s353 = sadd.s32 %s351, %s352
      %s354 = smul.addr %s353, 2
      %s355 = scalar_lea.vmem %s3, %s354
      // Predicated region
      $region33: #{module_wavenet_forward.2} parent=31 // pred_check
        %p356 = pneg %p123
      $region34: #{module_wavenet_forward.2} parent=31 // pred_check_branch
        %358 = sbr.rel (%p356) target = $region36
      $region35: #{module_wavenet_forward.2} parent=31 // pred_region
        _
      $region36: #{module_wavenet_forward.2} parent=31 // pred_fallthru
        _
    $region32: #{module_wavenet_forward.2} parent=5 // pred_fallthru
      _
    %p359 = scmp.le.s32.totalorder 2, %s9
    // Predicated region
    $region37: #{module_wavenet_forward.2} parent=5 // pred_check
      %p360 = pneg %p359
    $region38: #{module_wavenet_forward.2} parent=5 // pred_check_branch
      %362 = sbr.rel (%p360) target = $region40
    $region39: #{module_wavenet_forward.2} parent=5 // pred_region
      %s363 = ssub.s32 %s9, 2
      // Predicated region
      $region41: #{module_wavenet_forward.2} parent=39 // pred_check
        %p364 = pneg %p129
      $region42: #{module_wavenet_forward.2} parent=39 // pred_check_branch
        %366 = sbr.rel (%p364) target = $region44
      $region43: #{module_wavenet_forward.2} parent=39 // pred_region
        %p367 = scmp.lt.s32.totalorder %s20, 1
        %s368 = scalar_select %p367, %s20, 1
        %p369 = scmp.lt.s32.totalorder %s21, 2
        %s370 = scalar_select %p369, %s21, 2
        %s371 = smul.addr %s368, 3
        %s372 = sadd.s32 %s370, %s371
        %s373 = smul.addr %s372, 2
        %s374 = scalar_lea.vmem %s3, %s373
      $region44: #{module_wavenet_forward.2} parent=39 // pred_fallthru
        _
    $region40: #{module_wavenet_forward.2} parent=5 // pred_fallthru
      _
  $region6: #{module_wavenet_forward.2} parent=0 // loop_footer
    %s13 = sadd.s32 1, %s9
  $region7: #{module_wavenet_forward.2} parent=0 // loop_footer_branch
    %8 = sbr.rel target = $region3
  $region8: #{module_wavenet_forward.2} parent=0 // loop_exit
    _

// kernel: module_wavenet_forward.3
$region0: #{module_wavenet_forward.3}
  #allocation0 [shape = 'u32[]', space=smem, size = 0x4, offset = 0x4, fixed_abs, tag = 'smem constant byte address 0x4 - core index']
  #allocation1 [shape = 'u32[144,128]{1,0:T(1,128)}', space=vmem, size = 0x12000, scoped, tag = 'internal scratch']
  %s0 = inlined_call_operand.vmem [shape: f32[2,32,64], index: 0, kind: input, shape index: {}]
  %s1 = inlined_call_operand.vmem [shape: f32[2,3,2,64], index: 1, kind: input, shape index: {}]
  %s2 = inlined_call_operand.vmem [shape: f32[128,128], index: 2, kind: input, shape index: {}]
  %s3 = inlined_call_operand.vmem [shape: f32[2,128], index: 3, kind: input, shape index: {}]
  %s4 = inlined_call_operand.vmem [shape: f32[2,24,128], index: 4, kind: output, shape index: {0}]
  %s5 = inlined_call_operand.vmem [shape: f32[2,24,128], index: 5, kind: output, shape index: {1}]
  %6 = xla_tuple %s4, %s5
  %s7 = sld [smem:[#allocation0]]
  $region57: #{module_wavenet_forward.3} parent=0
    _
  %s9 = ssub.s32 1, %s7
  %s10 = scalar_select 0, %s9, %s7
  loop: start=0, step=1, limit=8
  $region2: #{module_wavenet_forward.3} parent=0 // loop_pre_header
    _
  $region3: #{module_wavenet_forward.3} parent=0 // loop_header
    %s12 = sphi 0, %s16
    %p13 = scmp.ge.s32.totalorder %s12, 8
    %s19 = sphi 0, %s31
    %s20 = sphi 0, %s27
    %s21 = sphi 0, %s19
    %s22 = sphi 0, %s20
    %s23 = sphi 0, %s21
    %s24 = sphi 0, %s22
    %s36 = sphi 0, %s38
    %s39 = sphi 0, %s36
    %s40 = sphi 0, %s39
    %s56 = sphi 0, %s40
    %s64 = sphi 0, %s66
    %s67 = sphi 0, %s64
    %s68 = sphi 0, %s67
    %s84 = sphi 0, %s68
    %s88 = sphi 0, %s88
    %s90 = sphi 0, %s88
    %s91 = sphi 0, %s90
    %s105 = sphi 0, %s91
    %s109 = sphi 0, %s109
    %s111 = sphi 0, %s109
    %s112 = sphi 0, %s111
    %s126 = sphi 0, %s112
    %s134 = sphi 0, %s136
    %s137 = sphi 0, %s134
    %s138 = sphi 0, %s137
    %s154 = sphi 0, %s138
    %s162 = sphi 0, %s164
    %s165 = sphi 0, %s162
    %s166 = sphi 0, %s165
    %s182 = sphi 0, %s166
  $region4: #{module_wavenet_forward.3} parent=0 // loop_header_branch
    %15 = sbr.rel (%p13) target = $region8
  $region5: #{module_wavenet_forward.3} parent=0 // loop_body
    %s17 = ssub.s32 %s12, 1
    %s18 = ssub.s32 %s12, 2
    %s25 = sadd.s32 1, %s20
    %p26 = scmp.ge.s32.totalorder %s25, 3
    %s27 = scalar_select %p26, 0, %s25
    %s28 = sadd.s32 1, %s19
    %s29 = scalar_select %p26, %s28, %s19
    %p30 = scmp.ge.s32.totalorder %s29, 2
    %s31 = scalar_select %p30, 0, %s29
    %s32 = ssub.s32 %s19, %s31
    %s33 = ssub.s32 %s20, %s27
    %s34 = sor.u32 %s32, %s33
    %p35 = scmp.eq.s32.totalorder %s34, 0
    %s37 = sadd.s32 %s36, 1
    %s38 = scalar_select %p35, %s36, %s37
    %p41 = pneg %p35
    %p42 = scmp.eq.s32.totalorder %s12, 5
    %p43 = por %p41, %p42
    %p44 = scmp.ne.s32.totalorder %s36, %s39
    %p45 = scmp.eq.s32.totalorder %s12, 0
    %p46 = por %p44, %p45
    %p47 = scmp.ne.s32.totalorder %s36, %s39
    %p48 = scmp.eq.s32.totalorder %s17, 5
    %p49 = por %p47, %p48
    %p50 = scmp.ne.s32.totalorder %s39, %s40
    %p51 = scmp.eq.s32.totalorder %s17, 0
    %p52 = por %p50, %p51
    %p53 = scmp.ne.s32.totalorder %s39, %s40
    %p54 = scmp.eq.s32.totalorder %s18, 5
    %p55 = por %p53, %p54
    %p57 = scmp.ne.s32.totalorder %s40, %s56
    %p58 = scmp.eq.s32.totalorder %s18, 0
    %p59 = por %p57, %p58
    %s60 = ssub.s32 %s19, %s31
    %s61 = ssub.s32 %s20, %s27
    %s62 = sor.u32 %s60, %s61
    %p63 = scmp.eq.s32.totalorder %s62, 0
    %s65 = sadd.s32 %s64, 1
    %s66 = scalar_select %p63, %s64, %s65
    %p69 = pneg %p63
    %p70 = scmp.eq.s32.totalorder %s12, 5
    %p71 = por %p69, %p70
    %p72 = scmp.ne.s32.totalorder %s64, %s67
    %p73 = scmp.eq.s32.totalorder %s12, 0
    %p74 = por %p72, %p73
    %p75 = scmp.ne.s32.totalorder %s64, %s67
    %p76 = scmp.eq.s32.totalorder %s17, 5
    %p77 = por %p75, %p76
    %p78 = scmp.ne.s32.totalorder %s67, %s68
    %p79 = scmp.eq.s32.totalorder %s17, 0
    %p80 = por %p78, %p79
    %p81 = scmp.ne.s32.totalorder %s67, %s68
    %p82 = scmp.eq.s32.totalorder %s18, 5
    %p83 = por %p81, %p82
    %p85 = scmp.ne.s32.totalorder %s68, %s84
    %p86 = scmp.eq.s32.totalorder %s18, 0
    %p87 = por %p85, %p86
    %s89 = sadd.s32 %s88, 1
    %p92 = scmp.eq.s32.totalorder %s12, 5
    %p93 = scmp.ne.s32.totalorder %s88, %s90
    %p94 = scmp.eq.s32.totalorder %s12, 0
    %p95 = por %p93, %p94
    %p96 = scmp.ne.s32.totalorder %s88, %s90
    %p97 = scmp.eq.s32.totalorder %s17, 5
    %p98 = por %p96, %p97
    %p99 = scmp.ne.s32.totalorder %s90, %s91
    %p100 = scmp.eq.s32.totalorder %s17, 0
    %p101 = por %p99, %p100
    %p102 = scmp.ne.s32.totalorder %s90, %s91
    %p103 = scmp.eq.s32.totalorder %s18, 5
    %p104 = por %p102, %p103
    %p106 = scmp.ne.s32.totalorder %s91, %s105
    %p107 = scmp.eq.s32.totalorder %s18, 0
    %p108 = por %p106, %p107
    %s110 = sadd.s32 %s109, 1
    %p113 = scmp.eq.s32.totalorder %s12, 5
    %p114 = scmp.ne.s32.totalorder %s109, %s111
    %p115 = scmp.eq.s32.totalorder %s12, 0
    %p116 = por %p114, %p115
    %p117 = scmp.ne.s32.totalorder %s109, %s111
    %p118 = scmp.eq.s32.totalorder %s17, 5
    %p119 = por %p117, %p118
    %p120 = scmp.ne.s32.totalorder %s111, %s112
    %p121 = scmp.eq.s32.totalorder %s17, 0
    %p122 = por %p120, %p121
    %p123 = scmp.ne.s32.totalorder %s111, %s112
    %p124 = scmp.eq.s32.totalorder %s18, 5
    %p125 = por %p123, %p124
    %p127 = scmp.ne.s32.totalorder %s112, %s126
    %p128 = scmp.eq.s32.totalorder %s18, 0
    %p129 = por %p127, %p128
    %s130 = ssub.s32 %s19, %s31
    %s131 = ssub.s32 %s20, %s27
    %s132 = sor.u32 %s130, %s131
    %p133 = scmp.eq.s32.totalorder %s132, 0
    %s135 = sadd.s32 %s134, 1
    %s136 = scalar_select %p133, %s134, %s135
    %p139 = pneg %p133
    %p140 = scmp.eq.s32.totalorder %s12, 5
    %p141 = por %p139, %p140
    %p142 = scmp.ne.s32.totalorder %s134, %s137
    %p143 = scmp.eq.s32.totalorder %s12, 0
    %p144 = por %p142, %p143
    %p145 = scmp.ne.s32.totalorder %s134, %s137
    %p146 = scmp.eq.s32.totalorder %s17, 5
    %p147 = por %p145, %p146
    %p148 = scmp.ne.s32.totalorder %s137, %s138
    %p149 = scmp.eq.s32.totalorder %s17, 0
    %p150 = por %p148, %p149
    %p151 = scmp.ne.s32.totalorder %s137, %s138
    %p152 = scmp.eq.s32.totalorder %s18, 5
    %p153 = por %p151, %p152
    %p155 = scmp.ne.s32.totalorder %s138, %s154
    %p156 = scmp.eq.s32.totalorder %s18, 0
    %p157 = por %p155, %p156
    %s158 = ssub.s32 %s19, %s31
    %s159 = ssub.s32 %s20, %s27
    %s160 = sor.u32 %s158, %s159
    %p161 = scmp.eq.s32.totalorder %s160, 0
    %s163 = sadd.s32 %s162, 1
    %s164 = scalar_select %p161, %s162, %s163
    %p167 = pneg %p161
    %p168 = scmp.eq.s32.totalorder %s12, 5
    %p169 = por %p167, %p168
    %p170 = scmp.ne.s32.totalorder %s162, %s165
    %p171 = scmp.eq.s32.totalorder %s12, 0
    %p172 = por %p170, %p171
    %p173 = scmp.ne.s32.totalorder %s162, %s165
    %p174 = scmp.eq.s32.totalorder %s17, 5
    %p175 = por %p173, %p174
    %p176 = scmp.ne.s32.totalorder %s165, %s166
    %p177 = scmp.eq.s32.totalorder %s17, 0
    %p178 = por %p176, %p177
    %p179 = scmp.ne.s32.totalorder %s165, %s166
    %p180 = scmp.eq.s32.totalorder %s18, 5
    %p181 = por %p179, %p180
    %p183 = scmp.ne.s32.totalorder %s166, %s182
    %p184 = scmp.eq.s32.totalorder %s18, 0
    %p185 = por %p183, %p184
    %p186 = scmp.le.s32.totalorder 1, %s12
    %p187 = scmp.lt.s32.totalorder %s12, 7
    %p188 = pnand %p186, %p187
    %p189 = pneg %p188
    // Predicated region
    $region9: #{module_wavenet_forward.3} parent=5 // pred_check
      _
    $region10: #{module_wavenet_forward.3} parent=5 // pred_check_branch
      %191 = sbr.rel (%p188) target = $region12
    $region11: #{module_wavenet_forward.3} parent=5 // pred_region
      %s192 = ssub.s32 %s12, 1
      // Predicated region
      $region13: #{module_wavenet_forward.3} parent=11 // pred_check
        %p193 = pneg %p101
      $region14: #{module_wavenet_forward.3} parent=11 // pred_check_branch
        %195 = sbr.rel (%p193) target = $region16
      $region15: #{module_wavenet_forward.3} parent=11 // pred_region
        _
      $region16: #{module_wavenet_forward.3} parent=11 // pred_fallthru
        _
      // Predicated region
      $region17: #{module_wavenet_forward.3} parent=11 // pred_check
        %p196 = pneg %p122
      $region18: #{module_wavenet_forward.3} parent=11 // pred_check_branch
        %198 = sbr.rel (%p196) target = $region20
      $region19: #{module_wavenet_forward.3} parent=11 // pred_region
        _
      $region20: #{module_wavenet_forward.3} parent=11 // pred_fallthru
        _
    $region12: #{module_wavenet_forward.3} parent=5 // pred_fallthru
      _
    %p199 = scmp.lt.s32.totalorder %s12, 6
    // Predicated region
    $region21: #{module_wavenet_forward.3} parent=5 // pred_check
      %p200 = pneg %p199
    $region22: #{module_wavenet_forward.3} parent=5 // pred_check_branch
      %202 = sbr.rel (%p200) target = $region24
    $region23: #{module_wavenet_forward.3} parent=5 // pred_region
      // Predicated region
      $region25: #{module_wavenet_forward.3} parent=23 // pred_check
        %p203 = pneg %p46
      $region26: #{module_wavenet_forward.3} parent=23 // pred_check_branch
        %205 = sbr.rel (%p203) target = $region28
      $region27: #{module_wavenet_forward.3} parent=23 // pred_region
        %p206 = scmp.lt.s32.totalorder %s19, 1
        %s207 = scalar_select %p206, %s19, 1
        %p208 = scmp.lt.s32.totalorder %s20, 3
        %s209 = scalar_select %p208, %s20, 3
        %s210 = smul.addr %s207, 4
        %s211 = sadd.s32 %s209, %s210
        %s212 = smul.addr %s211, 8
        %s213 = scalar_lea.vmem %s0, %s212
      $region28: #{module_wavenet_forward.3} parent=23 // pred_fallthru
        _
      // Predicated region
      $region29: #{module_wavenet_forward.3} parent=23 // pred_check
        %p214 = pneg %p74
      $region30: #{module_wavenet_forward.3} parent=23 // pred_check_branch
        %216 = sbr.rel (%p214) target = $region32
      $region31: #{module_wavenet_forward.3} parent=23 // pred_region
        %p217 = scmp.lt.s32.totalorder %s19, 1
        %s218 = scalar_select %p217, %s19, 1
        %p219 = scmp.lt.s32.totalorder %s20, 2
        %s220 = scalar_select %p219, %s20, 2
        %s221 = smul.addr %s218, 3
        %s222 = sadd.s32 %s220, %s221
        %s223 = smul.addr %s222, 2
        %s224 = scalar_lea.vmem %s1, %s223
      $region32: #{module_wavenet_forward.3} parent=23 // pred_fallthru
        _
    $region24: #{module_wavenet_forward.3} parent=5 // pred_fallthru
      _
    %p225 = scmp.le.s32.totalorder 1, %s12
    %p226 = scmp.lt.s32.totalorder %s12, 7
    %p227 = pnand %p225, %p226
    %p228 = pneg %p227
    // Predicated region
    $region33: #{module_wavenet_forward.3} parent=5 // pred_check
      _
    $region34: #{module_wavenet_forward.3} parent=5 // pred_check_branch
      %230 = sbr.rel (%p227) target = $region36
    $region35: #{module_wavenet_forward.3} parent=5 // pred_region
      %s231 = ssub.s32 %s12, 1
      %p232 = scmp.lt.s32.totalorder %s21, 1
      %s233 = scalar_select %p232, %s21, 1
      %p234 = scmp.lt.s32.totalorder %s22, 3
      %s235 = scalar_select %p234, %s22, 3
      %s236 = smul.addr %s233, 4
      %s237 = sadd.s32 %s235, %s236
      %s238 = smul.addr %s237, 8
      %s239 = scalar_lea.vmem %s0, %s238
      %p240 = pneg %p52
      %p241 = pneg %p49
      %p242 = scmp.lt.s32.totalorder %s21, 1
      %s243 = scalar_select %p242, %s21, 1
      %p244 = scmp.lt.s32.totalorder %s22, 2
      %s245 = scalar_select %p244, %s22, 2
      %s246 = smul.addr %s243, 3
      %s247 = sadd.s32 %s245, %s246
      %s248 = smul.addr %s247, 2
      %s249 = scalar_lea.vmem %s1, %s248
      %p250 = pneg %p80
      %p251 = pneg %p77
      %p252 = pneg %p101
      %p253 = pneg %p98
      %p254 = pneg %p122
      %p255 = pneg %p119
      %p256 = pneg %p150
      %p257 = pneg %p147
      %p258 = scmp.lt.s32.totalorder %s21, 1
      %s259 = scalar_select %p258, %s21, 1
      %p260 = scmp.lt.s32.totalorder %s22, 2
      %s261 = scalar_select %p260, %s22, 2
      %s262 = smul.addr %s259, 3
      %s263 = sadd.s32 %s261, %s262
      %s264 = smul.addr %s263, 8
      %s265 = scalar_lea.vmem %s4, %s264
      %p266 = pneg %p178
      %p267 = pneg %p175
      %p268 = scmp.lt.s32.totalorder %s21, 1
      %s269 = scalar_select %p268, %s21, 1
      %p270 = scmp.lt.s32.totalorder %s22, 2
      %s271 = scalar_select %p270, %s22, 2
      %s272 = smul.addr %s269, 3
      %s273 = sadd.s32 %s271, %s272
      %s274 = smul.addr %s273, 8
      %s275 = scalar_lea.vmem %s5, %s274
      %p276 = scmp.lt.s32.totalorder %s21, 1
      %s277 = scalar_select %p276, %s21, 1
      %p278 = scmp.lt.s32.totalorder %s22, 3
      %s279 = scalar_select %p278, %s22, 3
      %s280 = smul.addr %s277, 4
      %s281 = sadd.s32 %s279, %s280
      %s282 = smul.addr %s281, 8
      %s283 = scalar_lea.vmem %s0, %s282
      %p284 = scmp.lt.s32.totalorder %s21, 1
      %s285 = scalar_select %p284, %s21, 1
      %p286 = scmp.lt.s32.totalorder %s22, 2
      %s287 = scalar_select %p286, %s22, 2
      %s288 = smul.addr %s285, 3
      %s289 = sadd.s32 %s287, %s288
      %s290 = smul.addr %s289, 2
      %s291 = scalar_lea.vmem %s1, %s290
      %p292 = scmp.lt.s32.totalorder %s21, 1
      %s293 = scalar_select %p292, %s21, 1
      %p294 = scmp.lt.s32.totalorder %s22, 2
      %s295 = scalar_select %p294, %s22, 2
      %s296 = smul.addr %s293, 3
      %s297 = sadd.s32 %s295, %s296
      %s298 = smul.addr %s297, 8
      %s299 = scalar_lea.vmem %s4, %s298
      %p300 = scmp.lt.s32.totalorder %s21, 1
      %s301 = scalar_select %p300, %s21, 1
      %p302 = scmp.lt.s32.totalorder %s22, 2
      %s303 = scalar_select %p302, %s22, 2
      %s304 = smul.addr %s301, 3
      %s305 = sadd.s32 %s303, %s304
      %s306 = smul.addr %s305, 8
      %s307 = scalar_lea.vmem %s5, %s306
      %v308 = vld [vmem:[%s283] sm:$0xff]
      %v309 = vld [vmem:[%s291] sm:$0x3]
      %vm312 = vcmask 1046528
      %v313 = vrot.slane %v308, 1
      %v314 = vrot.slane %v309, 1
      %v315 = vsel %vm312, %v313, %v314
      %316 = vrot.lane.b32.xlu0 %v315, 64
      %v317 = vpop.permute.xlu0 %316
      %vm319 = vcmask 523264
      %v320 = vsel %vm319, %v308, %v317
      %v321 = vld [vmem:[%s2] sm:$0xff]
      %v322 = vld [vmem:[%s2 + $0x8] sm:$0xff]
      %v323 = vld [vmem:[%s2 + $0x10] sm:$0xff]
      %v324 = vld [vmem:[%s2 + $0x18] sm:$0xff]
      %v325 = vld [vmem:[%s2 + $0x20] sm:$0xff]
      %v326 = vld [vmem:[%s2 + $0x28] sm:$0xff]
      %v327 = vld [vmem:[%s2 + $0x30] sm:$0xff]
      %v328 = vld [vmem:[%s2 + $0x38] sm:$0xff]
      %v329 = vld [vmem:[%s2 + $0x40] sm:$0xff]
      %v330 = vld [vmem:[%s2 + $0x48] sm:$0xff]
      %v331 = vld [vmem:[%s2 + $0x50] sm:$0xff]
      %v332 = vld [vmem:[%s2 + $0x58] sm:$0xff]
      %v333 = vld [vmem:[%s2 + $0x60] sm:$0xff]
      %v334 = vld [vmem:[%s2 + $0x68] sm:$0xff]
      %v335 = vld [vmem:[%s2 + $0x70] sm:$0xff]
      %v336 = vld [vmem:[%s2 + $0x78] sm:$0xff]
      %337 = vmatprep.subr.mxu0 0.0
      %338 = vmatpush1.msra.mxu0 %v321
      %339 = vmatprep.subr.mxu0 0.0
      %340 = vmatpush1.msra.mxu0 %v322
      %341 = vmatprep.subr.mxu0 0.0
      %342 = vmatpush1.msra.mxu0 %v323
      %343 = vmatprep.subr.mxu0 0.0
      %344 = vmatpush1.msra.mxu0 %v324
      %345 = vmatprep.subr.mxu0 0.0
      %346 = vmatpush1.msra.mxu0 %v325
      %347 = vmatprep.subr.mxu0 0.0
      %348 = vmatpush1.msra.mxu0 %v326
      %349 = vmatprep.subr.mxu0 0.0
      %350 = vmatpush1.msra.mxu0 %v327
      %351 = vmatprep.subr.mxu0 0.0
      %352 = vmatpush1.msra.mxu0 %v328
      %353 = vmatprep.subr.mxu0 0.0
      %354 = vmatpush1.msra.mxu0 %v329
      %355 = vmatprep.subr.mxu0 0.0
      %356 = vmatpush1.msra.mxu0 %v330
      %357 = vmatprep.subr.mxu0 0.0
      %358 = vmatpush1.msra.mxu0 %v331
      %359 = vmatprep.subr.mxu0 0.0
      %360 = vmatpush1.msra.mxu0 %v332
      %361 = vmatprep.subr.mxu0 0.0
      %362 = vmatpush1.msra.mxu0 %v333
      %363 = vmatprep.subr.mxu0 0.0
      %364 = vmatpush1.msra.mxu0 %v334
      %365 = vmatprep.subr.mxu0 0.0
      %366 = vmatpush1.msra.mxu0 %v335
      %367 = vmatprep.subr.mxu0 0.0
      %368 = vmatpush1.msra.mxu0 %v336
      %369 = vmatprep.subr.mxu0 0.0
      %370 = vmatpush1.msra.mxu0 0.0
      %371 = vmatprep.subr.mxu0 0.0
      %372 = vmatpush1.msra.mxu0 0.0
      %373 = vmatprep.subr.mxu0 0.0
      %374 = vmatpush1.msra.mxu0 0.0
      %375 = vmatprep.subr.mxu0 0.0
      %376 = vmatpush1.msra.mxu0 0.0
      %377 = vmatprep.subr.mxu0 0.0
      %378 = vmatpush1.msra.mxu0 0.0
      %379 = vmatprep.subr.mxu0 0.0
      %380 = vmatpush1.msra.mxu0 0.0
      %381 = vmatprep.subr.mxu0 0.0
      %382 = vmatpush1.msra.mxu0 0.0
      %383 = vmatprep.subr.mxu0 0.0
      %384 = vmatpush1.msra.mxu0 0.0
      %385 = vmatprep.subr.mxu0 0.0
      %386 = vmatpush1.msra.mxu0 0.0
      %387 = vmatprep.subr.mxu0 0.0
      %388 = vmatpush1.msra.mxu0 0.0
      %389 = vmatprep.subr.mxu0 0.0
      %390 = vmatpush1.msra.mxu0 0.0
      %391 = vmatprep.subr.mxu0 0.0
      %392 = vmatpush1.msra.mxu0 0.0
      %393 = vmatprep.subr.mxu0 0.0
      %394 = vmatpush1.msra.mxu0 0.0
      %395 = vmatprep.subr.mxu0 0.0
      %396 = vmatpush1.msra.mxu0 0.0
      %397 = vmatprep.subr.mxu0 0.0
      %398 = vmatpush1.msra.mxu0 0.0
      %399 = vmatprep.subr.mxu0 0.0
      %400 = vmatpush1.msra.mxu0 0.0
      %401 = vmatprep.mubr.f32.mxu0 0.0
      %402 = vmatmul.mubr.f32.gmra.mrb[0].mxu0 %v320
      %v403 = vpop.f32.mrb[0].mxu0
      %v404 = vadd.f32 0.0, %v403
      %v405 = vpop.f32.mrb[0].mxu0
      %406 = vdwg.mxu0
      %v407 = vld [vmem:[%s3] sm:$0x1]
      %v408 = vlaneseq
      %v409 = vshrl.u32 %v408, 7
      %v410 = vsub.s32 0, %v409
      %v411 = vrot.slane %v407, %v410
      %v412 = vmul.f32 %v404, %v411
      %v413 = vld [vmem:[%s3 + $0x1] sm:$0x1]
      %v414 = vlaneseq
      %v415 = vshrl.u32 %v414, 7
      %v416 = vsub.s32 0, %v415
      %v417 = vrot.slane %v413, %v416
      %v418 = vadd.f32 %v412, %v417
      %v419 = vand.u32 2147483647, %v418
      %v420 = vsub.f32 0.0, %v419
      %v421 = vmul.f32 %v420, 1.442695
      %v422 = vpow.pop %v421
      %v423 = vmul.f32 %v422, %v422
      %vm424 = vcmp.ge.f32.partialorder %v418, 0.0
      %v425 = vsel %vm424, 1.0, %v422
      %v426 = vsub.f32 1.0, %v423
      %v427 = vsub.f32 %v423, 1.0
      %v428 = vsel %vm424, %v426, %v427
      %v429 = vmul.f32 %v425, %v428
      %v430 = vadd.f32 %v423, 1.0
      %v431 = vadd.f32 %v422, 1.0
      %v432 = vmul.f32 %v430, %v431
      %v433 = vrcp.pop %v432
      %v434 = vmul.f32 %v429, %v433
      %435 = vst [vmem:[%s299] sm:$0xff] %v434
      %v436 = vsel %vm319, %v308, 0.0
      %v437 = vsel %vm319, %v309, 0.0
      %vm440 = vcmask 1045504
      %v441 = vrot.slane %v436, 2
      %v442 = vrot.slane %v437, 2
      %v443 = vsel %vm440, %v441, %v442
      %v445 = vadd.f32 %v434, %v443
      %446 = vst [vmem:[%s307] sm:$0xff] %v445
      %p447 = scmp.lt.s32.totalorder %s21, 1
      %s448 = scalar_select %p447, %s21, 1
      %p449 = scmp.lt.s32.totalorder %s22, 2
      %s450 = scalar_select %p449, %s22, 2
      %s451 = smul.addr %s448, 3
      %s452 = sadd.s32 %s450, %s451
      %s453 = smul.addr %s452, 8
      %s454 = scalar_lea.vmem %s4, %s453
      %p455 = scmp.lt.s32.totalorder %s21, 1
      %s456 = scalar_select %p455, %s21, 1
      %p457 = scmp.lt.s32.totalorder %s22, 2
      %s458 = scalar_select %p457, %s22, 2
      %s459 = smul.addr %s456, 3
      %s460 = sadd.s32 %s458, %s459
      %s461 = smul.addr %s460, 8
      %s462 = scalar_lea.vmem %s5, %s461
      // Predicated region
      $region37: #{module_wavenet_forward.3} parent=35 // pred_check
        %p463 = pneg %p147
      $region38: #{module_wavenet_forward.3} parent=35 // pred_check_branch
        %465 = sbr.rel (%p463) target = $region40
      $region39: #{module_wavenet_forward.3} parent=35 // pred_region
        _
      $region40: #{module_wavenet_forward.3} parent=35 // pred_fallthru
        _
      // Predicated region
      $region41: #{module_wavenet_forward.3} parent=35 // pred_check
        %p466 = pneg %p175
      $region42: #{module_wavenet_forward.3} parent=35 // pred_check_branch
        %468 = sbr.rel (%p466) target = $region44
      $region43: #{module_wavenet_forward.3} parent=35 // pred_region
        _
      $region44: #{module_wavenet_forward.3} parent=35 // pred_fallthru
        _
    $region36: #{module_wavenet_forward.3} parent=5 // pred_fallthru
      _
    %p469 = scmp.le.s32.totalorder 2, %s12
    // Predicated region
    $region45: #{module_wavenet_forward.3} parent=5 // pred_check
      %p470 = pneg %p469
    $region46: #{module_wavenet_forward.3} parent=5 // pred_check_branch
      %472 = sbr.rel (%p470) target = $region48
    $region47: #{module_wavenet_forward.3} parent=5 // pred_region
      %s473 = ssub.s32 %s12, 2
      // Predicated region
      $region49: #{module_wavenet_forward.3} parent=47 // pred_check
        %p474 = pneg %p153
      $region50: #{module_wavenet_forward.3} parent=47 // pred_check_branch
        %476 = sbr.rel (%p474) target = $region52
      $region51: #{module_wavenet_forward.3} parent=47 // pred_region
        %p477 = scmp.lt.s32.totalorder %s23, 1
        %s478 = scalar_select %p477, %s23, 1
        %p479 = scmp.lt.s32.totalorder %s24, 2
        %s480 = scalar_select %p479, %s24, 2
        %s481 = smul.addr %s478, 3
        %s482 = sadd.s32 %s480, %s481
        %s483 = smul.addr %s482, 8
        %s484 = scalar_lea.vmem %s4, %s483
      $region52: #{module_wavenet_forward.3} parent=47 // pred_fallthru
        _
      // Predicated region
      $region53: #{module_wavenet_forward.3} parent=47 // pred_check
        %p485 = pneg %p181
      $region54: #{module_wavenet_forward.3} parent=47 // pred_check_branch
        %487 = sbr.rel (%p485) target = $region56
      $region55: #{module_wavenet_forward.3} parent=47 // pred_region
        %p488 = scmp.lt.s32.totalorder %s23, 1
        %s489 = scalar_select %p488, %s23, 1
        %p490 = scmp.lt.s32.totalorder %s24, 2
        %s491 = scalar_select %p490, %s24, 2
        %s492 = smul.addr %s489, 3
        %s493 = sadd.s32 %s491, %s492
        %s494 = smul.addr %s493, 8
        %s495 = scalar_lea.vmem %s5, %s494
      $region56: #{module_wavenet_forward.3} parent=47 // pred_fallthru
        _
    $region48: #{module_wavenet_forward.3} parent=5 // pred_fallthru
      _
  $region6: #{module_wavenet_forward.3} parent=0 // loop_footer
    %s16 = sadd.s32 1, %s12
  $region7: #{module_wavenet_forward.3} parent=0 // loop_footer_branch
    %11 = sbr.rel target = $region3
  $region8: #{module_wavenet_forward.3} parent=0 // loop_exit
    _

</llo_original>
